<compile_context>
chip_gen: v5e
topology: v5e:2x2
jax: 0.10.0
libtpu: 0.0.40
codegen_flags: <defaults>
</compile_context>

<pallas_src>
import functools

import jax
import jax.numpy as jnp
from jax import lax
from jax.experimental import pallas as pl
from jax.experimental.pallas import tpu as pltpu


def mater_kernel(audio_ref, text_ref, mask_ref, audio_out_ref, text_out_ref,
                 acc_ref, *, inv_t_audio, text_chunk):
    """Grid = (batch blocks, audio-time blocks); the time axis is a reduction."""
    k = pl.program_id(1)

    # ---- init audio-sum accumulator at the start of each batch block ----
    @pl.when(k == 0)
    def _init():
        acc_ref[...] = jnp.zeros_like(acc_ref)

    # ---- streamed audio time reduction (accumulate in f32) ----
    # The bf16->f32 cast is expected to fuse into the sublane reduction; if a
    # bundle dump ever shows a materialized f32 tile copy, split into chunked
    # adds over sublane groups.
    acc_ref[...] += jnp.sum(audio_ref[...].astype(jnp.float32), axis=1)

    # ---- finalize: text pooling, normalize, write both embedding halves ----
    @pl.when(k == pl.num_programs(1) - 1)
    def _finalize():
        bt, t_text, h_text = text_ref.shape

        # audio mean pooling: streamed sum / true T_audio (padded frames are
        # zero, so they never perturb the sum).
        audio_out_ref[...] = acc_ref[...] * jnp.float32(inv_t_audio)

        # text masked mean pooling (torch.clamp(min=1e-9)), chunked over the
        # token axis so f32 temporaries stay bounded for large (Tt, Ht).
        msk_all = mask_ref[...].astype(jnp.float32)          # (bt, Tt, 1) tiny
        counts = jnp.sum(msk_all, axis=1)                     # (bt, 1)

        n_chunks = t_text // text_chunk
        if n_chunks <= 1:
            summed = jnp.sum(text_ref[...].astype(jnp.float32) * msk_all,
                             axis=1)                           # (bt, Ht)
        else:
            def body(c, s):
                start = pl.multiple_of(c * text_chunk, text_chunk)
                txt = text_ref[:, pl.ds(start, text_chunk), :].astype(jnp.float32)
                msk = mask_ref[:, pl.ds(start, text_chunk), :].astype(jnp.float32)
                return s + jnp.sum(txt * msk, axis=1)

            summed = lax.fori_loop(0, n_chunks, body,
                                   jnp.zeros((bt, h_text), jnp.float32))

        sent = summed / jnp.maximum(counts, 1e-9)

        # F.normalize(p=2, dim=1, eps=1e-12) == x * rsqrt(max(||x||^2, 1e-24))
        sent = sent * lax.rsqrt(
            jnp.maximum(jnp.sum(sent * sent, axis=1, keepdims=True), 1e-24))

        text_out_ref[...] = sent


# ----------------------------- tiling plumbing -----------------------------

def _round_up(x, m):
    return -(-x // m) * m


def _tpu_generation_info():
    """(physical VMEM bytes per core, multi-TensorCore?) with safe fallbacks."""
    vmem_phys = None
    try:
        info = pltpu.get_tpu_info()
        v = getattr(info, "vmem_capacity_bytes", None)
        if v:
            vmem_phys = int(v)
    except Exception:
        pass
    multi_core = False
    try:
        multi_core = "v7" in jax.devices()[0].device_kind.lower()
    except Exception:
        pass
    if vmem_phys is not None and vmem_phys <= (64 << 20):
        multi_core = True          # v7x-class part: 64 MiB per TC, 2 TCs
    if vmem_phys is None:
        vmem_phys = 64 << 20       # conservative default if detection fails
    return vmem_phys, multi_core


def _pick_batch_tile(B, want_split, fits):
    # bt is the sublane dim of the 2-D output blocks: multiple of 8 or full B.
    cands = sorted({B} | {c for c in range(8, B, 8) if B % c == 0}, reverse=True)
    if want_split:
        split = [c for c in cands if B // c >= 2 and fits(c)]
        if split:
            return split[0]        # largest tile that still gives >= 2 blocks
    fit = [c for c in cands if fits(c)]
    return fit[0] if fit else cands[-1]


def _pick_time_tile(Ta, frame_bytes, budget_bytes):
    """(time tile, padded Ta).  Tile is a multiple of 8 sized to the budget;
    prefers an exact divisor of Ta (no padding copy) when one is close."""
    if Ta <= 8:
        return Ta, Ta
    tt = (budget_bytes // (2 * frame_bytes)) // 8 * 8     # double-buffered
    tt = max(8, min(tt, _round_up(Ta, 8)))
    lo = max(8, (tt // 2) // 8 * 8)
    for cand in range(tt, lo - 1, -8):
        if Ta % cand == 0:
            return cand, Ta                                 # no padding needed
    return tt, _round_up(Ta, tt)                            # zero-pad Ta


def _pick_text_chunk(Tt):
    if Tt <= 256:
        return Tt
    for c in range(256, 63, -8):
        if Tt % c == 0:
            return c
    return Tt


# --------------------------------- wrapper ---------------------------------

def mater_forward(audio_hs, text_hs, attention_mask, w, b,
                  *, b_tile=None, t_tile=None, text_chunk=None):
    """MATeR fusion head. Returns (scores [B], overall_embedding [B, D])."""
    B, Ta, Ha = audio_hs.shape
    _, Tt, Ht = text_hs.shape
    D = Ha + Ht

    vmem_phys, multi_core = _tpu_generation_info()
    # v5e/v6e (128 MiB physical) -> 96 MiB scoped; v7x (64 MiB/TC) -> 48 MiB.
    vmem_limit = int(min(96 << 20, (vmem_phys * 3) // 4))

    text_isz = jnp.dtype(text_hs.dtype).itemsize
    audio_isz = jnp.dtype(audio_hs.dtype).itemsize

    def _resident_bytes(bt_):
        # text + mask (double-buffered), two f32 output blocks (x2), f32 acc.
        return (2 * bt_ * Tt * Ht * text_isz + 2 * bt_ * Tt * text_isz
                + 2 * bt_ * D * 4 + bt_ * Ha * 4)

    if b_tile is None:
        bt = _pick_batch_tile(B, multi_core,
                              lambda c: _resident_bytes(c) <= vmem_limit // 2)
    else:
        bt = b_tile
    if B % bt or (bt != B and bt % 8):
        raise ValueError(f"bad batch tile {bt} for B={B}")

    frame_bytes = bt * Ha * audio_isz
    if t_tile is None:
        audio_budget = max(2 << 20, vmem_limit - _resident_bytes(bt) - (2 << 20))
        tt, Ta_pad = _pick_time_tile(Ta, frame_bytes, audio_budget)
    else:
        tt = t_tile
        Ta_pad = Ta if Ta % tt == 0 else _round_up(Ta, tt)
        if tt != Ta_pad and tt % 8:
            raise ValueError(f"bad time tile {tt} for T_audio={Ta}")

    if Ta_pad > Ta:
        # Zero padding is exact for the sum; the mean divides by the true Ta.
        audio_hs = jnp.pad(audio_hs, ((0, 0), (0, Ta_pad - Ta), (0, 0)))

    if text_chunk is None:
        text_chunk = _pick_text_chunk(Tt)
    if Tt % text_chunk or (text_chunk != Tt and text_chunk % 8):
        raise ValueError(f"bad text chunk {text_chunk} for T_text={Tt}")

    # Mask as (B, Tt, 1) at the activation dtype: Tt sits on sublanes
    # (matching the text layout); bf16 is exact for 0/1 mask values.
    mask = attention_mask.reshape(B, Tt, 1).astype(text_hs.dtype)

    grid = (B // bt, Ta_pad // tt)

    kernel = functools.partial(mater_kernel, inv_t_audio=1.0 / Ta,
                               text_chunk=text_chunk)

    audio_emb, text_emb = pl.pallas_call(
        kernel,
        out_shape=(
            jax.ShapeDtypeStruct((B, Ha), jnp.float32),
            jax.ShapeDtypeStruct((B, Ht), jnp.float32),
        ),
        grid_spec=pltpu.PrefetchScalarGridSpec(
            num_scalar_prefetch=0,
            grid=grid,
            in_specs=[
                # audio: streamed over the time (reduction) axis
                pl.BlockSpec((bt, tt, Ha), lambda i, k: (i, k, 0)),
                # text / mask: resident across the k axis (same block index)
                pl.BlockSpec((bt, Tt, Ht), lambda i, k: (i, 0, 0)),
                pl.BlockSpec((bt, Tt, 1), lambda i, k: (i, 0, 0)),
            ],
            out_specs=(
                pl.BlockSpec((bt, Ha), lambda i, k: (i, 0)),
                pl.BlockSpec((bt, Ht), lambda i, k: (i, 0)),
            ),
            scratch_shapes=[pltpu.VMEM((bt, Ha), jnp.float32)],
        ),
        compiler_params=pltpu.CompilerParams(
            dimension_semantics=("parallel", "arbitrary"),
            vmem_limit_bytes=vmem_limit,
        ),
    )(audio_hs, text_hs, mask)

    # overall_embedding = cat(audio, text): tiny B*D*4-byte copy vs the audio
    # HBM stream; keeps the kernel's output stores lane-dense and full-width.
    overall = jnp.concatenate([audio_emb, text_emb], axis=1)

    # MLP head Linear(D, 1) as a tiny XLA matvec (avoids last-dim-1 masked
    # stores and cross-lane reductions inside the kernel).
    w32 = jnp.asarray(w, jnp.float32).reshape(D, 1)
    b32 = jnp.asarray(b, jnp.float32).reshape(1, 1)
    score = (overall @ w32 + b32).reshape(-1)          # torch.flatten
    return score, overall


# ------------------------------ reference/test ------------------------------

def _reference(audio_hs, text_hs, attention_mask, w, b):
    a = audio_hs.astype(jnp.float32)
    t = text_hs.astype(jnp.float32)
    m = attention_mask.astype(jnp.float32)[:, :, None]
    audio_emb = jnp.sum(a, axis=1) / a.shape[1]
    sent = jnp.sum(t * m, axis=1) / jnp.maximum(jnp.sum(m, axis=1), 1e-9)
    sent = sent / jnp.maximum(
        jnp.sqrt(jnp.sum(sent * sent, axis=1, keepdims=True)), 1e-12)
    overall = jnp.concatenate([audio_emb, sent], axis=1)
    w32 = jnp.asarray(w, jnp.float32).reshape(-1, 1)
    b32 = jnp.asarray(b, jnp.float32).reshape(1, 1)
    score = (overall @ w32 + b32).reshape(-1)
    return score, overall


def _run_case(key, B, Ta, Ha, Tt, Ht, lengths, **tile_kwargs):
    k1, k2, k3 = jax.random.split(key, 3)
    D = Ha + Ht
    # bf16 encoder outputs (pooling still accumulates in f32 inside the kernel)
    audio_hs = jax.random.normal(k1, (B, Ta, Ha), dtype=jnp.float32).astype(jnp.bfloat16)
    text_hs = jax.random.normal(k2, (B, Tt, Ht), dtype=jnp.float32).astype(jnp.bfloat16)
    attention_mask = (jnp.arange(Tt)[None, :] < lengths[:, None]).astype(jnp.float32)
    w = jax.random.normal(k3, (D, 1), dtype=jnp.float32) * 0.05
    b = jnp.zeros((1, 1), dtype=jnp.float32)

    scores, emb = mater_forward(audio_hs, text_hs, attention_mask, w, b,
                                **tile_kwargs)
    jax.block_until_ready((scores, emb))

    ref_scores, ref_emb = _reference(audio_hs, text_hs, attention_mask, w, b)
    assert scores.shape == (B,) and emb.shape == (B, D)
    assert jnp.allclose(scores, ref_scores, atol=2e-5, rtol=1e-4), "score mismatch"
    assert jnp.allclose(emb, ref_emb, atol=2e-5, rtol=1e-4), "embedding mismatch"


if __name__ == "__main__":
    key = jax.random.PRNGKey(0)
    ka, kb, kc, kd = jax.random.split(key, 4)

    # Case 1: small shapes; t_tile=8 exercises the multi-step time reduction.
    _run_case(ka, B=2, Ta=16, Ha=32, Tt=8, Ht=32,
              lengths=jnp.array([5, 7], dtype=jnp.int32), t_tile=8)

    # Case 2: batch tiling (grid 2x4) + chunked text masked-mean (2 chunks).
    _run_case(kb, B=16, Ta=64, Ha=128, Tt=16, Ht=128,
              lengths=jnp.arange(1, 17, dtype=jnp.int32),
              b_tile=8, t_tile=16, text_chunk=8)

    # Case 3: Ta with no multiple-of-8 divisor -> zero-padded time axis.
    _run_case(kc, B=4, Ta=20, Ha=64, Tt=12, Ht=64,
              lengths=jnp.array([3, 6, 9, 12], dtype=jnp.int32), t_tile=8)

    # Case 4: fully automatic (generation-aware) tile selection.
    _run_case(kd, B=8, Ta=40, Ha=64, Tt=24, Ht=64,
              lengths=jnp.array([2, 4, 6, 8, 10, 12, 14, 16], dtype=jnp.int32))

    print("KERNEL_OK")
</pallas_src>

<mosaic_0001>
module attributes {stable_mosaic.version = 11 : i64} {
  func.func @mater_kernel(%arg0: i32, %arg1: i32, %arg2: memref<2x8x32xbf16, #tpu.memory_space<vmem>>, %arg3: memref<2x8x32xbf16, #tpu.memory_space<vmem>>, %arg4: memref<2x8x1xbf16, #tpu.memory_space<vmem>>, %arg5: memref<2x32xf32, #tpu.memory_space<vmem>>, %arg6: memref<2x32xf32, #tpu.memory_space<vmem>>, %arg7: memref<2x32xf32, #tpu.memory_space<vmem>>) attributes {dimension_semantics = [#tpu.dimension_semantics<parallel>, #tpu.dimension_semantics<arbitrary>], iteration_bounds = array<i64: 1, 2>, scalar_prefetch = 0 : i64, scratch_operands = 1 : i64, tpu.core_type = #tpu.core_type<tc>, window_params = [{transform_indices = @transform_0, window_bounds = array<i64: 2, 8, 32>}, {transform_indices = @transform_1, window_bounds = array<i64: 2, 8, 32>}, {transform_indices = @transform_2, window_bounds = array<i64: 2, 8, 1>}, {transform_indices = @transform_3, window_bounds = array<i64: 2, 32>}, {transform_indices = @transform_4, window_bounds = array<i64: 2, 32>}]} {
    %c0_i32 = arith.constant 0 : i32
    %0 = arith.cmpi eq, %arg1, %c0_i32 : i32
    %1 = arith.extui %0 : i1 to i32
    %c0_i32_0 = arith.constant 0 : i32
    %2 = arith.cmpi ne, %1, %c0_i32_0 : i32
    scf.if %2 {
      %cst_8 = arith.constant 0.000000e+00 : f32
      %12 = vector.broadcast %cst_8 : f32 to vector<2x32xf32>
      %c0_9 = arith.constant 0 : index
      %c0_10 = arith.constant 0 : index
      %13 = vector.load %arg7[%c0_9, %c0_10] : memref<2x32xf32, #tpu.memory_space<vmem>>, vector<2x32xf32>
      tpu.vector_store %arg7[%c0_9, %c0_10], %12 {strides = array<i32>} : memref<2x32xf32, #tpu.memory_space<vmem>>, vector<2x32xf32>,
    } else {
    }
    %c0 = arith.constant 0 : index
    %c0_1 = arith.constant 0 : index
    %3 = vector.load %arg7[%c0, %c0_1] : memref<2x32xf32, #tpu.memory_space<vmem>>, vector<2x32xf32>
    %c0_2 = arith.constant 0 : index
    %c0_3 = arith.constant 0 : index
    %c0_4 = arith.constant 0 : index
    %4 = vector.load %arg2[%c0_2, %c0_3, %c0_4] : memref<2x8x32xbf16, #tpu.memory_space<vmem>>, vector<2x8x32xbf16>
    %5 = arith.extf %4 : vector<2x8x32xbf16> to vector<2x8x32xf32>
    %cst = arith.constant dense<0.000000e+00> : vector<2x32xf32>
    %6 = vector.multi_reduction <add>, %5, %cst [1] : vector<2x8x32xf32> to vector<2x32xf32>
    %7 = arith.addf %3, %6 : vector<2x32xf32>
    %c0_5 = arith.constant 0 : index
    %c0_6 = arith.constant 0 : index
    %8 = vector.load %arg7[%c0_5, %c0_6] : memref<2x32xf32, #tpu.memory_space<vmem>>, vector<2x32xf32>
    tpu.vector_store %arg7[%c0_5, %c0_6], %7 {strides = array<i32>} : memref<2x32xf32, #tpu.memory_space<vmem>>, vector<2x32xf32>,
    %c1_i32 = arith.constant 1 : i32
    %9 = arith.cmpi eq, %arg1, %c1_i32 : i32
    %10 = arith.extui %9 : i1 to i32
    %c0_i32_7 = arith.constant 0 : i32
    %11 = arith.cmpi ne, %10, %c0_i32_7 : i32
    scf.if %11 {
      %c0_8 = arith.constant 0 : index
      %c0_9 = arith.constant 0 : index
      %12 = vector.load %arg7[%c0_8, %c0_9] : memref<2x32xf32, #tpu.memory_space<vmem>>, vector<2x32xf32>
      %cst_10 = arith.constant 6.250000e-02 : f32
      %13 = vector.broadcast %cst_10 : f32 to vector<2x32xf32>
      %14 = arith.mulf %12, %13 : vector<2x32xf32>
      %c0_11 = arith.constant 0 : index
      %c0_12 = arith.constant 0 : index
      %15 = vector.load %arg5[%c0_11, %c0_12] : memref<2x32xf32, #tpu.memory_space<vmem>>, vector<2x32xf32>
      tpu.vector_store %arg5[%c0_11, %c0_12], %14 {strides = array<i32>} : memref<2x32xf32, #tpu.memory_space<vmem>>, vector<2x32xf32>,
      %c0_13 = arith.constant 0 : index
      %c0_14 = arith.constant 0 : index
      %c0_15 = arith.constant 0 : index
      %16 = vector.load %arg4[%c0_13, %c0_14, %c0_15] : memref<2x8x1xbf16, #tpu.memory_space<vmem>>, vector<2x8x1xbf16>
      %17 = arith.extf %16 : vector<2x8x1xbf16> to vector<2x8x1xf32>
      %cst_16 = arith.constant dense<0.000000e+00> : vector<2x1xf32>
      %18 = vector.multi_reduction <add>, %17, %cst_16 [1] : vector<2x8x1xf32> to vector<2x1xf32>
      %c0_17 = arith.constant 0 : index
      %c0_18 = arith.constant 0 : index
      %c0_19 = arith.constant 0 : index
      %19 = vector.load %arg3[%c0_17, %c0_18, %c0_19] : memref<2x8x32xbf16, #tpu.memory_space<vmem>>, vector<2x8x32xbf16>
      %20 = arith.extf %19 : vector<2x8x32xbf16> to vector<2x8x32xf32>
      %21 = vector.broadcast %17 : vector<2x8x1xf32> to vector<2x8x32xf32>
      %22 = arith.mulf %20, %21 : vector<2x8x32xf32>
      %cst_20 = arith.constant dense<0.000000e+00> : vector<2x32xf32>
      %23 = vector.multi_reduction <add>, %22, %cst_20 [1] : vector<2x8x32xf32> to vector<2x32xf32>
      %cst_21 = arith.constant 9.99999971E-10 : f32
      %24 = vector.broadcast %cst_21 : f32 to vector<2x1xf32>
      %25 = arith.maximumf %18, %24 : vector<2x1xf32>
      %26 = vector.broadcast %25 : vector<2x1xf32> to vector<2x32xf32>
      %27 = arith.divf %23, %26 : vector<2x32xf32>
      %28 = arith.mulf %27, %27 : vector<2x32xf32>
      %cst_22 = arith.constant dense<0.000000e+00> : vector<2xf32>
      %29 = vector.multi_reduction <add>, %28, %cst_22 [1] : vector<2x32xf32> to vector<2xf32>
      %30 = vector.shape_cast %29 : vector<2xf32> to vector<2x1xf32>
      %cst_23 = arith.constant 1.000000e-24 : f32
      %31 = vector.broadcast %cst_23 : f32 to vector<2x1xf32>
      %32 = arith.maximumf %30, %31 : vector<2x1xf32>
      %33 = math.rsqrt %32 : vector<2x1xf32>
      %34 = vector.broadcast %33 : vector<2x1xf32> to vector<2x32xf32>
      %35 = arith.mulf %27, %34 : vector<2x32xf32>
      %c0_24 = arith.constant 0 : index
      %c0_25 = arith.constant 0 : index
      %36 = vector.load %arg6[%c0_24, %c0_25] : memref<2x32xf32, #tpu.memory_space<vmem>>, vector<2x32xf32>
      tpu.vector_store %arg6[%c0_24, %c0_25], %35 {strides = array<i32>} : memref<2x32xf32, #tpu.memory_space<vmem>>, vector<2x32xf32>,
    } else {
    }
    return
  }
  func.func @transform_0(%arg0: i32, %arg1: i32) -> (i32, i32, i32) {
    %c0_i32 = arith.constant 0 : i32
    %c0_i32_0 = arith.constant 0 : i32
    return %arg0, %arg1, %c0_i32 : i32, i32, i32
  }
  func.func @transform_1(%arg0: i32, %arg1: i32) -> (i32, i32, i32) {
    %c0_i32 = arith.constant 0 : i32
    %c0_i32_0 = arith.constant 0 : i32
    %c0_i32_1 = arith.constant 0 : i32
    return %arg0, %c0_i32, %c0_i32_0 : i32, i32, i32
  }
  func.func @transform_2(%arg0: i32, %arg1: i32) -> (i32, i32, i32) {
    %c0_i32 = arith.constant 0 : i32
    %c0_i32_0 = arith.constant 0 : i32
    %c0_i32_1 = arith.constant 0 : i32
    return %arg0, %c0_i32, %c0_i32_0 : i32, i32, i32
  }
  func.func @transform_3(%arg0: i32, %arg1: i32) -> (i32, i32) {
    %c0_i32 = arith.constant 0 : i32
    %c0_i32_0 = arith.constant 0 : i32
    return %arg0, %c0_i32 : i32, i32
  }
  func.func @transform_4(%arg0: i32, %arg1: i32) -> (i32, i32) {
    %c0_i32 = arith.constant 0 : i32
    %c0_i32_0 = arith.constant 0 : i32
    return %arg0, %c0_i32 : i32, i32
  }
}

</mosaic_0001>

<llo_original>
// kernel: tpu_custom_call.1
$region0: #{tpu_custom_call.1}
  #allocation0 [shape = 'u32[]', space=smem, size = 0x4, offset = 0x4, fixed_abs, tag = 'smem constant byte address 0x4 - core index']
  #allocation1 [shape = 'u32[72,128]{1,0:T(1,128)}', space=vmem, size = 0x9000, scoped, tag = 'internal scratch']
  #allocation2 [shape = 'f32[2,32]{1,0:T(2,128)}', space=vmem, size = 0x400, scoped, tag = 'scratch operand']
  %s0 = inlined_call_operand.hbm [shape: bf16[2,16,32], index: 0, kind: input, shape index: {}]
  %s1 = inlined_call_operand.vmem [shape: bf16[2,8,32], index: 1, kind: input, shape index: {}]
  %s2 = inlined_call_operand.vmem [shape: bf16[2,8,1], index: 2, kind: input, shape index: {}]
  %s3 = inlined_call_operand.hbm [shape: f32[2,32], index: 3, kind: output, shape index: {0}]
  %s4 = inlined_call_operand.hbm [shape: f32[2,32], index: 4, kind: output, shape index: {1}]
  %5 = xla_tuple %s3, %s4
  %s6 = sld [smem:[#allocation0]]
  $region65: #{tpu_custom_call.1} parent=0
    _
  %s8 = ssub.s32 1, %s6
  %s9 = scalar_select 0, %s8, %s6
  $region1: #{tpu_custom_call.1} parent=0
    #allocation3 [shape = 'u8[8192]{0}', space=vmem, size = 0x2000, scoped, tag = 'input window, operand 0']
    #allocation4 [shape = 's32[2]{0}', space=sflag, size = 0x8, scoped, tag = 'scoped memory for tpu_custom_call.1']
    #allocation5 [shape = 's32[2]{0}', space=sflag, size = 0x8, scoped, tag = 'scoped memory for tpu_custom_call.1']
    #allocation6 [shape = 'u8[1024]{0}', space=vmem, size = 0x400, scoped, tag = 'output window, operand 0, single buffered']
    #allocation7 [shape = 'u8[1024]{0}', space=vmem, size = 0x400, scoped, tag = 'output window, operand 1, single buffered']
    #allocation8 [shape = 's32[1]{0}', space=sflag, size = 0x4, scoped, tag = 'scoped memory for tpu_custom_call.1']
    %10 = vsyncpa [#allocation4], 0
    %s11 = scalar_lea.sflag [#allocation4], 1
    %12 = vsyncpa %s11, 0
    %13 = vsyncpa [#allocation5], 0
    %14 = vsyncpa [#allocation8], 0
    loop: start=0, step=1, limit=4
    $region2: #{tpu_custom_call.1} parent=1 // loop_pre_header
      _
    $region3: #{tpu_custom_call.1} parent=1 // loop_header
      %s16 = sphi 0, %s20
      %p17 = scmp.ge.s32.totalorder %s16, 4
      %s23 = sphi 0, %s35
      %s24 = sphi 0, %s31
      %s25 = sphi 0, %s23
      %s26 = sphi 0, %s24
      %s27 = sphi 0, %s25
      %s28 = sphi 0, %s26
      %s40 = sphi 0, %s42
      %s43 = sphi 0, %s40
      %s44 = sphi 0, %s43
      %s60 = sphi 0, %s44
      %s66 = sphi 0, %s68
      %s69 = sphi 0, %s66
      %s70 = sphi 0, %s69
      %s86 = sphi 0, %s70
      %s92 = sphi 0, %s94
      %s95 = sphi 0, %s92
      %s96 = sphi 0, %s95
      %s112 = sphi 0, %s96
      %s118 = sphi 0, %s120
      %s121 = sphi 0, %s118
      %s122 = sphi 0, %s121
      %s138 = sphi 0, %s122
      %s144 = sphi 0, %s146
      %s147 = sphi 0, %s144
      %s148 = sphi 0, %s147
      %s164 = sphi 0, %s148
    $region4: #{tpu_custom_call.1} parent=1 // loop_header_branch
      %19 = sbr.rel (%p17) target = $region8
    $region5: #{tpu_custom_call.1} parent=1 // loop_body
      %s21 = ssub.s32 %s16, 1
      %s22 = ssub.s32 %s16, 2
      %s29 = sadd.s32 1, %s24
      %p30 = scmp.ge.s32.totalorder %s29, 2
      %s31 = scalar_select %p30, 0, %s29
      %s32 = sadd.s32 1, %s23
      %s33 = scalar_select %p30, %s32, %s23
      %p34 = scmp.ge.s32.totalorder %s33, 1
      %s35 = scalar_select %p34, 0, %s33
      %s36 = ssub.s32 %s23, %s35
      %s37 = ssub.s32 %s24, %s31
      %s38 = sor.u32 %s36, %s37
      %p39 = scmp.eq.s32.totalorder %s38, 0
      %s41 = sadd.s32 %s40, 1
      %s42 = scalar_select %p39, %s40, %s41
      %p45 = pneg %p39
      %p46 = scmp.eq.s32.totalorder %s16, 1
      %p47 = por %p45, %p46
      %p48 = scmp.ne.s32.totalorder %s40, %s43
      %p49 = scmp.eq.s32.totalorder %s16, 0
      %p50 = por %p48, %p49
      %p51 = scmp.ne.s32.totalorder %s40, %s43
      %p52 = scmp.eq.s32.totalorder %s21, 1
      %p53 = por %p51, %p52
      %p54 = scmp.ne.s32.totalorder %s43, %s44
      %p55 = scmp.eq.s32.totalorder %s21, 0
      %p56 = por %p54, %p55
      %p57 = scmp.ne.s32.totalorder %s43, %s44
      %p58 = scmp.eq.s32.totalorder %s22, 1
      %p59 = por %p57, %p58
      %p61 = scmp.ne.s32.totalorder %s44, %s60
      %p62 = scmp.eq.s32.totalorder %s22, 0
      %p63 = por %p61, %p62
      %s64 = ssub.s32 %s23, %s35
      %p65 = scmp.eq.s32.totalorder %s64, 0
      %s67 = sadd.s32 %s66, 1
      %s68 = scalar_select %p65, %s66, %s67
      %p71 = pneg %p65
      %p72 = scmp.eq.s32.totalorder %s16, 1
      %p73 = por %p71, %p72
      %p74 = scmp.ne.s32.totalorder %s66, %s69
      %p75 = scmp.eq.s32.totalorder %s16, 0
      %p76 = por %p74, %p75
      %p77 = scmp.ne.s32.totalorder %s66, %s69
      %p78 = scmp.eq.s32.totalorder %s21, 1
      %p79 = por %p77, %p78
      %p80 = scmp.ne.s32.totalorder %s69, %s70
      %p81 = scmp.eq.s32.totalorder %s21, 0
      %p82 = por %p80, %p81
      %p83 = scmp.ne.s32.totalorder %s69, %s70
      %p84 = scmp.eq.s32.totalorder %s22, 1
      %p85 = por %p83, %p84
      %p87 = scmp.ne.s32.totalorder %s70, %s86
      %p88 = scmp.eq.s32.totalorder %s22, 0
      %p89 = por %p87, %p88
      %s90 = ssub.s32 %s23, %s35
      %p91 = scmp.eq.s32.totalorder %s90, 0
      %s93 = sadd.s32 %s92, 1
      %s94 = scalar_select %p91, %s92, %s93
      %p97 = pneg %p91
      %p98 = scmp.eq.s32.totalorder %s16, 1
      %p99 = por %p97, %p98
      %p100 = scmp.ne.s32.totalorder %s92, %s95
      %p101 = scmp.eq.s32.totalorder %s16, 0
      %p102 = por %p100, %p101
      %p103 = scmp.ne.s32.totalorder %s92, %s95
      %p104 = scmp.eq.s32.totalorder %s21, 1
      %p105 = por %p103, %p104
      %p106 = scmp.ne.s32.totalorder %s95, %s96
      %p107 = scmp.eq.s32.totalorder %s21, 0
      %p108 = por %p106, %p107
      %p109 = scmp.ne.s32.totalorder %s95, %s96
      %p110 = scmp.eq.s32.totalorder %s22, 1
      %p111 = por %p109, %p110
      %p113 = scmp.ne.s32.totalorder %s96, %s112
      %p114 = scmp.eq.s32.totalorder %s22, 0
      %p115 = por %p113, %p114
      %s116 = ssub.s32 %s23, %s35
      %p117 = scmp.eq.s32.totalorder %s116, 0
      %s119 = sadd.s32 %s118, 1
      %s120 = scalar_select %p117, %s118, %s119
      %p123 = pneg %p117
      %p124 = scmp.eq.s32.totalorder %s16, 1
      %p125 = por %p123, %p124
      %p126 = scmp.ne.s32.totalorder %s118, %s121
      %p127 = scmp.eq.s32.totalorder %s16, 0
      %p128 = por %p126, %p127
      %p129 = scmp.ne.s32.totalorder %s118, %s121
      %p130 = scmp.eq.s32.totalorder %s21, 1
      %p131 = por %p129, %p130
      %p132 = scmp.ne.s32.totalorder %s121, %s122
      %p133 = scmp.eq.s32.totalorder %s21, 0
      %p134 = por %p132, %p133
      %p135 = scmp.ne.s32.totalorder %s121, %s122
      %p136 = scmp.eq.s32.totalorder %s22, 1
      %p137 = por %p135, %p136
      %p139 = scmp.ne.s32.totalorder %s122, %s138
      %p140 = scmp.eq.s32.totalorder %s22, 0
      %p141 = por %p139, %p140
      %s142 = ssub.s32 %s23, %s35
      %p143 = scmp.eq.s32.totalorder %s142, 0
      %s145 = sadd.s32 %s144, 1
      %s146 = scalar_select %p143, %s144, %s145
      %p149 = pneg %p143
      %p150 = scmp.eq.s32.totalorder %s16, 1
      %p151 = por %p149, %p150
      %p152 = scmp.ne.s32.totalorder %s144, %s147
      %p153 = scmp.eq.s32.totalorder %s16, 0
      %p154 = por %p152, %p153
      %p155 = scmp.ne.s32.totalorder %s144, %s147
      %p156 = scmp.eq.s32.totalorder %s21, 1
      %p157 = por %p155, %p156
      %p158 = scmp.ne.s32.totalorder %s147, %s148
      %p159 = scmp.eq.s32.totalorder %s21, 0
      %p160 = por %p158, %p159
      %p161 = scmp.ne.s32.totalorder %s147, %s148
      %p162 = scmp.eq.s32.totalorder %s22, 1
      %p163 = por %p161, %p162
      %p165 = scmp.ne.s32.totalorder %s148, %s164
      %p166 = scmp.eq.s32.totalorder %s22, 0
      %p167 = por %p165, %p166
      %p168 = scmp.le.s32.totalorder 1, %s16
      %p169 = scmp.lt.s32.totalorder %s16, 3
      %p170 = pnand %p168, %p169
      %p171 = pneg %p170
      // Predicated region
      $region9: #{tpu_custom_call.1} parent=5 // pred_check
        _
      $region10: #{tpu_custom_call.1} parent=5 // pred_check_branch
        %173 = sbr.rel (%p170) target = $region12
      $region11: #{tpu_custom_call.1} parent=5 // pred_region
        %s174 = ssub.s32 %s16, 1
        // Predicated region
        $region13: #{tpu_custom_call.1} parent=11 // pred_check
          %p175 = pneg %p82
        $region14: #{tpu_custom_call.1} parent=11 // pred_check_branch
          %177 = sbr.rel (%p175) target = $region16
        $region15: #{tpu_custom_call.1} parent=11 // pred_region
          %s178 = smul.u32 2, %s25
          %p179 = scmp.lt.s32.totalorder %s178, 1
          %s180 = scalar_select %p179, %s178, 1
          %s181 = smul.addr %s180, 4
          %s182 = scalar_lea.vmem %s1, %s181
          %s183 = smul.u32 2, %s25
        $region16: #{tpu_custom_call.1} parent=11 // pred_fallthru
          _
        // Predicated region
        $region17: #{tpu_custom_call.1} parent=11 // pred_check
          %p184 = pneg %p108
        $region18: #{tpu_custom_call.1} parent=11 // pred_check_branch
          %186 = sbr.rel (%p184) target = $region20
        $region19: #{tpu_custom_call.1} parent=11 // pred_region
          %s187 = smul.u32 2, %s25
          %p188 = scmp.lt.s32.totalorder %s187, 1
          %s189 = scalar_select %p188, %s187, 1
          %s190 = smul.addr %s189, 4
          %s191 = scalar_lea.vmem %s2, %s190
          %s192 = smul.u32 2, %s25
        $region20: #{tpu_custom_call.1} parent=11 // pred_fallthru
          _
      $region12: #{tpu_custom_call.1} parent=5 // pred_fallthru
        _
      %p193 = scmp.lt.s32.totalorder %s16, 2
      // Predicated region
      $region21: #{tpu_custom_call.1} parent=5 // pred_check
        %p194 = pneg %p193
      $region22: #{tpu_custom_call.1} parent=5 // pred_check_branch
        %196 = sbr.rel (%p194) target = $region24
      $region23: #{tpu_custom_call.1} parent=5 // pred_region
        // Predicated region
        $region25: #{tpu_custom_call.1} parent=23 // pred_check
          %p197 = pneg %p50
        $region26: #{tpu_custom_call.1} parent=23 // pred_check_branch
          %199 = sbr.rel (%p197) target = $region28
        $region27: #{tpu_custom_call.1} parent=23 // pred_region
          %s200 = sand.u32 %s40, 1
          %s201 = scalar_lea.sflag [#allocation4], %s200
          %s202 = sand.u32 %s40, 1
          %s203 = smul.addr %s202, 8
          %s204 = scalar_lea.vmem [#allocation3], %s203
          %s205 = smul.u32 2, %s23
          %207 = vsyncadd %s201, 0
          %s208 = smul.addr %s205, 2
          %s209 = sadd.s32 %s24, %s208
          %s210 = smul.addr %s209, 4
          %s211 = scalar_lea.hbm %s0, %s210
          %s212 = sshll.u32 %s211, 4
          %s213 = int_to_ptr.hbm [resolvable:$true] %s212
          %s214 = sshll.u32 %s204, 4
          %s215 = int_to_ptr.vmem [resolvable:$true] %s214
          %220 = dma.hbm_to_vmem [thread:$0]  %s213, 128, %s215, %s201, 128, 64, 4
        $region28: #{tpu_custom_call.1} parent=23 // pred_fallthru
          _
      $region24: #{tpu_custom_call.1} parent=5 // pred_fallthru
        _
      %p221 = scmp.le.s32.totalorder 1, %s16
      %p222 = scmp.lt.s32.totalorder %s16, 3
      %p223 = pnand %p221, %p222
      %p224 = pneg %p223
      // Predicated region
      $region29: #{tpu_custom_call.1} parent=5 // pred_check
        _
      $region30: #{tpu_custom_call.1} parent=5 // pred_check_branch
        %226 = sbr.rel (%p223) target = $region32
      $region31: #{tpu_custom_call.1} parent=5 // pred_region
        %s227 = ssub.s32 %s16, 1
        %s228 = sand.u32 %s43, 1
        %s229 = scalar_lea.sflag [#allocation4], %s228
        %s230 = sand.u32 %s43, 1
        %s231 = smul.addr %s230, 8
        %s232 = scalar_lea.vmem [#allocation3], %s231
        // Predicated region
        $region33: #{tpu_custom_call.1} parent=31 // pred_check
          %p233 = pneg %p56
        $region34: #{tpu_custom_call.1} parent=31 // pred_check_branch
          %235 = sbr.rel (%p233) target = $region36
        $region35: #{tpu_custom_call.1} parent=31 // pred_region
          %237 = dma.done %s229, 128
        $region36: #{tpu_custom_call.1} parent=31 // pred_fallthru
          _
        %s238 = sand.u32 %s43, 1
        %s239 = scalar_lea.sflag [#allocation4], %s238
        %s240 = sand.u32 %s43, 1
        %s241 = smul.addr %s240, 8
        %s242 = scalar_lea.vmem [#allocation3], %s241
        %p243 = pneg %p56
        %p244 = pneg %p53
        %s245 = smul.u32 2, %s25
        %p246 = scmp.lt.s32.totalorder %s245, 1
        %s247 = scalar_select %p246, %s245, 1
        %s248 = smul.addr %s247, 4
        %s249 = scalar_lea.vmem %s1, %s248
        %p250 = pneg %p82
        %p251 = pneg %p79
        %s252 = smul.u32 2, %s25
        %p253 = scmp.lt.s32.totalorder %s252, 1
        %s254 = scalar_select %p253, %s252, 1
        %s255 = smul.addr %s254, 4
        %s256 = scalar_lea.vmem %s2, %s255
        %p257 = pneg %p108
        %p258 = pneg %p105
        %p259 = pneg %p134
        %p260 = pneg %p131
        %p261 = pneg %p160
        %p262 = pneg %p157
        %s263 = smul.u32 2, %s25
        %s264 = smul.u32 2, %s25
        %p265 = scmp.lt.s32.totalorder %s264, 1
        %s266 = scalar_select %p265, %s264, 1
        %s267 = smul.addr %s266, 4
        %s268 = scalar_lea.vmem %s1, %s267
        %s269 = smul.u32 2, %s25
        %s270 = smul.u32 2, %s25
        %p271 = scmp.lt.s32.totalorder %s270, 1
        %s272 = scalar_select %p271, %s270, 1
        %s273 = smul.addr %s272, 4
        %s274 = scalar_lea.vmem %s2, %s273
        %s275 = smul.u32 2, %s25
        %p276 = scmp.eq.s32.totalorder %s26, 0
        // Predicated region
        $region37: #{tpu_custom_call.1} parent=31 // pred_check
          %p277 = pneg %p276
        $region38: #{tpu_custom_call.1} parent=31 // pred_check_branch
          %279 = sbr.rel (%p277) target = $region40
        $region39: #{tpu_custom_call.1} parent=31 // pred_region
          %vm280 = vcmask 254976
          %281 = vst.msk [vmem:[#allocation2] sm:$0x3] %vm280, 0.0
        $region40: #{tpu_custom_call.1} parent=31 // pred_fallthru
          _
        %v282 = vld [vmem:[#allocation2] sm:$0x3]
        %v283 = vld [vmem:[%s232] sm:$0xf]
        %v284 = vld [vmem:[%s232 + $0x4] sm:$0xf]
        %v285 = vunpack.c.l.bf16 %v283
        %v286 = vunpack.c.l.bf16 %v284
        %vm287 = vcmask 261120
        %v288 = vsel %vm287, %v285, 0.0
        %v289 = vrot.slane %v288, 4
        %v290 = vadd.f32 %v288, %v289
        %v291 = vrot.slane %v290, 2
        %v292 = vadd.f32 %v290, %v291
        %v293 = vrot.slane %v292, 1
        %v294 = vadd.f32 %v292, %v293
        %v295 = vsel %vm287, %v286, 0.0
        %v296 = vrot.slane %v295, 4
        %v297 = vadd.f32 %v295, %v296
        %v298 = vrot.slane %v297, 2
        %v299 = vadd.f32 %v297, %v298
        %v300 = vrot.slane %v299, 1
        %v301 = vadd.f32 %v299, %v300
        %vm304 = vcmask 1041409
        %v305 = vsel %vm304, %v301, %v294
        %v307 = vadd.f32 %v282, %v305
        %vm308 = vcmask 254976
        %309 = vst.msk [vmem:[#allocation2] sm:$0x3] %vm308, %v307
        %p310 = scmp.eq.s32.totalorder %s26, 1
        // Predicated region
        $region41: #{tpu_custom_call.1} parent=31 // pred_check
          %p311 = pneg %p310
        $region42: #{tpu_custom_call.1} parent=31 // pred_check_branch
          %313 = sbr.rel (%p311) target = $region44
        $region43: #{tpu_custom_call.1} parent=31 // pred_region
          %v314 = vld [vmem:[#allocation2] sm:$0x3]
          %v315 = vmul.f32 %v314, 0.0625
          %316 = vst.msk [vmem:[#allocation6] sm:$0x3] %vm308, %v315
          %v317 = vld [vmem:[%s274] sm:$0xf]
          %v318 = vld [vmem:[%s274 + $0x4] sm:$0xf]
          %v319 = vunpack.c.l.bf16 %v317
          %v320 = vunpack.c.l.bf16 %v318
          %vm321 = vcmask 7168
          %v322 = vsel %vm321, %v319, 0.0
          %v323 = vrot.slane %v322, 4
          %v324 = vadd.f32 %v322, %v323
          %v325 = vrot.slane %v324, 2
          %v326 = vadd.f32 %v324, %v325
          %v327 = vrot.slane %v326, 1
          %v328 = vadd.f32 %v326, %v327
          %v329 = vsel %vm321, %v320, 0.0
          %v330 = vrot.slane %v329, 4
          %v331 = vadd.f32 %v329, %v330
          %v332 = vrot.slane %v331, 2
          %v333 = vadd.f32 %v331, %v332
          %v334 = vrot.slane %v333, 1
          %v335 = vadd.f32 %v333, %v334
          %v336 = vld [vmem:[%s268] sm:$0xf]
          %v337 = vld [vmem:[%s268 + $0x4] sm:$0xf]
          %v338 = vunpack.c.l.bf16 %v336
          %v339 = vunpack.c.l.bf16 %v337
          %341 = vset.pattern.permute.xlu0 0
          %342 = vperm.xlu0 %341, %v319
          %v343 = vpop.permute.xlu0 %342
          %346 = vset.pattern.permute.xlu0 0
          %347 = vperm.xlu0 %346, %v320
          %v348 = vpop.permute.xlu0 %347
          %v350 = vmul.f32 %v338, %v343
          %v351 = vmul.f32 %v339, %v348
          %v352 = vsel %vm287, %v350, 0.0
          %v353 = vrot.slane %v352, 4
          %v354 = vadd.f32 %v352, %v353
          %v355 = vrot.slane %v354, 2
          %v356 = vadd.f32 %v354, %v355
          %v357 = vrot.slane %v356, 1
          %v358 = vadd.f32 %v356, %v357
          %v359 = vsel %vm287, %v351, 0.0
          %v360 = vrot.slane %v359, 4
          %v361 = vadd.f32 %v359, %v360
          %v362 = vrot.slane %v361, 2
          %v363 = vadd.f32 %v361, %v362
          %v364 = vrot.slane %v363, 1
          %v365 = vadd.f32 %v363, %v364
          %v366 = vmax.f32 %v328, 1e-09
          %v367 = vmax.f32 %v335, 1e-09
          %369 = vset.pattern.permute.xlu0 0
          %370 = vperm.xlu0 %369, %v366
          %v371 = vpop.permute.xlu0 %370
          %374 = vset.pattern.permute.xlu0 0
          %375 = vperm.xlu0 %374, %v367
          %v376 = vpop.permute.xlu0 %375
          %v378 = vrcp.pop %v371
          %v379 = vmul.f32 %v371, %v378
          %v380 = vsub.f32 1.0, %v379
          %v381 = vmul.f32 %v378, %v380
          %v382 = vadd.f32 %v378, %v381
          %vm383 = vweird.f32 %v371
          %vm384 = vweird.f32 %v378
          %vm385 = vmor %vm383, %vm384
          %v386 = vsel %vm385, %v378, %v382
          %v387 = vand.u32 2147483647, %v371
          %vm388 = vcmp.eq.f32.partialorder %v387, 8.507059e+37
          %v389 = vand.u32 %v371, 2147483648
          %v390 = vor.u32 1.1754944e-38, %v389
          %v391 = vsel %vm388, %v390, %v386
          %v392 = vmul.f32 %v358, %v391
          %v393 = vrcp.pop %v376
          %v394 = vmul.f32 %v376, %v393
          %v395 = vsub.f32 1.0, %v394
          %v396 = vmul.f32 %v393, %v395
          %v397 = vadd.f32 %v393, %v396
          %vm398 = vweird.f32 %v376
          %vm399 = vweird.f32 %v393
          %vm400 = vmor %vm398, %vm399
          %v401 = vsel %vm400, %v393, %v397
          %v402 = vand.u32 2147483647, %v376
          %vm403 = vcmp.eq.f32.partialorder %v402, 8.507059e+37
          %v404 = vand.u32 %v376, 2147483648
          %v405 = vor.u32 1.1754944e-38, %v404
          %v406 = vsel %vm403, %v405, %v401
          %v407 = vmul.f32 %v365, %v406
          %v408 = vmul.f32 %v392, %v392
          %v409 = vmul.f32 %v407, %v407
          %v412 = vsel %vm304, %v409, %v408
          %v414 = vsel %vm308, %v412, 0.0
          %415 = vadd.xlane.f32.xlu0 %v414
          %v416 = vpop.xlane.xlu0 %415
          %v417 = vmax.f32 %v416, 1e-24
          %v418 = vrsqrt.pop %v417
          %v419 = vmul.f32 %v418, %v417
          %v420 = vmul.f32 %v419, %v418
          %v421 = vmul.f32 0.5, %v420
          %v422 = vsub.f32 1.5, %v421
          %v423 = vmul.f32 %v418, %v422
          %vm424 = vweird.f32 %v417
          %vm425 = vweird.f32 %v418
          %vm426 = vmor %vm424, %vm425
          %v427 = vsel %vm426, %v418, %v423
          %v429 = vrot.slane %v427, 1
          %v432 = vmul.f32 %v392, %v427
          %v433 = vmul.f32 %v407, %v429
          %v436 = vrot.slane %v433, 7
          %v437 = vsel %vm304, %v436, %v432
          %439 = vst.msk [vmem:[#allocation7] sm:$0x3] %vm308, %v437
        $region44: #{tpu_custom_call.1} parent=31 // pred_fallthru
          _
        // Predicated region
        $region45: #{tpu_custom_call.1} parent=31 // pred_check
          %p440 = pneg %p131
        $region46: #{tpu_custom_call.1} parent=31 // pred_check_branch
          %442 = sbr.rel (%p440) target = $region48
        $region47: #{tpu_custom_call.1} parent=31 // pred_region
          %444 = vsyncadd [#allocation5], 0
          %s445 = smul.addr %s25, 2
          %s446 = scalar_lea.hbm %s3, %s445
          %s448 = sshll.u32 [#allocation6], 4
          %s449 = int_to_ptr.vmem [resolvable:$true] %s448
          %s450 = sshll.u32 %s446, 4
          %s451 = int_to_ptr.hbm [resolvable:$true] %s450
          %453 = dma.vmem_to_hbm [thread:$0]  %s449, 32, %s451, [#allocation5]
        $region48: #{tpu_custom_call.1} parent=31 // pred_fallthru
          _
        // Predicated region
        $region49: #{tpu_custom_call.1} parent=31 // pred_check
          %p454 = pneg %p157
        $region50: #{tpu_custom_call.1} parent=31 // pred_check_branch
          %456 = sbr.rel (%p454) target = $region52
        $region51: #{tpu_custom_call.1} parent=31 // pred_region
          %458 = vsyncadd [#allocation8], 0
          %s459 = smul.addr %s25, 2
          %s460 = scalar_lea.hbm %s4, %s459
          %s462 = sshll.u32 [#allocation7], 4
          %s463 = int_to_ptr.vmem [resolvable:$true] %s462
          %s464 = sshll.u32 %s460, 4
          %s465 = int_to_ptr.hbm [resolvable:$true] %s464
          %467 = dma.vmem_to_hbm [thread:$0]  %s463, 32, %s465, [#allocation8]
        $region52: #{tpu_custom_call.1} parent=31 // pred_fallthru
          _
        // Predicated region
        $region53: #{tpu_custom_call.1} parent=31 // pred_check
          %p468 = pneg %p131
        $region54: #{tpu_custom_call.1} parent=31 // pred_check_branch
          %470 = sbr.rel (%p468) target = $region56
        $region55: #{tpu_custom_call.1} parent=31 // pred_region
          %472 = dma.done [#allocation5], 32
        $region56: #{tpu_custom_call.1} parent=31 // pred_fallthru
          _
        // Predicated region
        $region57: #{tpu_custom_call.1} parent=31 // pred_check
          %p473 = pneg %p157
        $region58: #{tpu_custom_call.1} parent=31 // pred_check_branch
          %475 = sbr.rel (%p473) target = $region60
        $region59: #{tpu_custom_call.1} parent=31 // pred_region
          %477 = dma.done [#allocation8], 32
        $region60: #{tpu_custom_call.1} parent=31 // pred_fallthru
          _
      $region32: #{tpu_custom_call.1} parent=5 // pred_fallthru
        _
      %p478 = scmp.le.s32.totalorder 2, %s16
      // Predicated region
      $region61: #{tpu_custom_call.1} parent=5 // pred_check
        %p479 = pneg %p478
      $region62: #{tpu_custom_call.1} parent=5 // pred_check_branch
        %481 = sbr.rel (%p479) target = $region64
      $region63: #{tpu_custom_call.1} parent=5 // pred_region
        %s482 = ssub.s32 %s16, 2
      $region64: #{tpu_custom_call.1} parent=5 // pred_fallthru
        _
    $region6: #{tpu_custom_call.1} parent=1 // loop_footer
      %s20 = sadd.s32 1, %s16
    $region7: #{tpu_custom_call.1} parent=1 // loop_footer_branch
      %15 = sbr.rel target = $region3
    $region8: #{tpu_custom_call.1} parent=1 // loop_exit
      _
    %483 = vsyncpa [#allocation4], 1
    %s484 = scalar_lea.sflag [#allocation4], 1
    %485 = vsyncpa %s484, 1
    %486 = vsyncpa [#allocation5], 1
    %s487 = scalar_lea.sflag [#allocation5], 1
    %488 = vsyncpa %s487, 1
    %489 = vsyncpa [#allocation8], 1

</llo_original>
